<compile_context>
chip_gen: v5e
topology: v5e:2x2
jax: 0.10.0
libtpu: 0.0.40
codegen_flags: <defaults>
</compile_context>

<pallas_src>
import functools

import jax
import jax.numpy as jnp
from jax.experimental import pallas as pl
from jax.experimental.pallas import tpu as pltpu


def _round_up(x, m):
    return ((x + m - 1) // m) * m


def _cdiv(a, b):
    return (a + b - 1) // b


@functools.lru_cache(maxsize=None)
def _vmem_capacity_bytes():
    try:
        return int(pltpu.get_tpu_info().vmem_capacity_bytes)
    except Exception:
        return 64 * 1024 * 1024  # conservative: v7x per-TensorCore VMEM


@functools.lru_cache(maxsize=None)
def _tensorcores_per_device():
    # Heuristic: only v7x-class chips have 2 TensorCores behind one device.
    try:
        kind = jax.devices()[0].device_kind.lower()
        if "v7" in kind or "7x" in kind:
            return 2
    except Exception:
        pass
    return 1


_TM_CANDIDATES = (1024, 768, 512, 384, 256, 192, 128, 96, 64, 48, 32, 16)


def _plan(E, H, compute_dtype):
    """Chip-aware tile plan.  Independent of the batch size M."""
    cdt = jnp.dtype(compute_dtype).itemsize
    odt = 4                               # budget output tile as f32 (worst case)
    vmem_cap = _vmem_capacity_bytes()
    budget = int(vmem_cap * 0.72)         # headroom for Mosaic internal scratch

    # MXU-friendly alignment: 256 for the 2x256x256 MXU (v6e/v7x); 128 floor
    # (harmless on v5e's 128x128 MXU, avoids blowing up tiny dims).
    E_pad = _round_up(E, 128 if E <= 128 else 256)
    H_al = _round_up(H, 128 if H <= 128 else 256)

    # Budgets assume default double-buffering for every pipelined block; the
    # Buffered(1) hints only reduce real usage, never increase it.

    # ---- weights-resident fast path: both padded weights live in VMEM for the
    # whole call (weights DMA'd from HBM once per call, no k axis, no acc).
    w_res = 2 * (E_pad * H_al * cdt) * 2
    if w_res <= budget:
        for tm in _TM_CANDIDATES:
            need = (w_res
                    + 2 * tm * E_pad * cdt        # x tile (double-buffered)
                    + 2 * tm * E_pad * odt        # out tile (double-buffered)
                    + tm * H_al * 4               # f32 hidden intermediate
                    + tm * E_pad * 4)             # f32 second-matmul result
            if need <= budget:
                return dict(mode="resident", E_pad=E_pad, H_pad=H_al, th=H_al,
                            tm_max=tm, need=need, vmem_cap=vmem_cap)

    # ---- tiled path: stream (E_pad, th)/(th, E_pad) weight slabs along k and
    # accumulate the second matmul in an f32 VMEM scratch.
    best = None
    for th in sorted({min(512, H_al), min(256, H_al)}, reverse=True):
        H_pad = _round_up(H, th)
        for tm in _TM_CANDIDATES:
            need = (2 * (E_pad * th * cdt) * 2    # w1 + w2 slabs (double-buffered)
                    + 2 * tm * E_pad * cdt        # x tile
                    + 2 * tm * E_pad * odt        # out tile
                    + tm * E_pad * 4              # f32 accumulator scratch
                    + tm * th * 4)                # f32 hidden intermediate
            if need <= budget:
                # tm is the intensity lever (weight bytes amortised over tm rows):
                # prefer the largest tm, tie-break on larger th.
                if best is None or (tm, th) > (best["tm_max"], best["th"]):
                    best = dict(mode="tiled", E_pad=E_pad, H_pad=H_pad, th=th,
                                tm_max=tm, need=need, vmem_cap=vmem_cap)
                break
    if best is None:  # pathological shapes / tiny VMEM: smallest legal tiles
        th = min(256, H_al)
        best = dict(mode="tiled", E_pad=E_pad, H_pad=_round_up(H, th), th=th,
                    tm_max=16, need=budget, vmem_cap=vmem_cap)
    return best


def _spec(shape, index_map, buffers=None):
    if buffers is not None and hasattr(pl, "Buffered"):
        return pl.BlockSpec(shape, index_map, pipeline_mode=pl.Buffered(buffers))
    return pl.BlockSpec(shape, index_map)


# ----------------------------- kernels ---------------------------------------
def _ffn_kernel_resident(x_ref, w1_ref, w2_ref, o_ref):
    # x: (tm, E_pad), w1: (E_pad, H_pad), w2: (H_pad, E_pad), o: (tm, E_pad)
    h = jnp.dot(x_ref[...], w1_ref[...], preferred_element_type=jnp.float32)
    h = jnp.maximum(h, 0.0)
    o_ref[...] = jnp.dot(h.astype(w2_ref.dtype), w2_ref[...],
                         preferred_element_type=jnp.float32).astype(o_ref.dtype)


def _ffn_kernel_tiled(x_ref, w1_ref, w2_ref, o_ref, acc_ref):
    # x: (tm, E_pad), w1: (E_pad, th), w2: (th, E_pad), acc: (tm, E_pad) f32
    k = pl.program_id(1)

    @pl.when(k == 0)
    def _():
        acc_ref[...] = jnp.zeros_like(acc_ref)

    h = jnp.dot(x_ref[...], w1_ref[...], preferred_element_type=jnp.float32)
    h = jnp.maximum(h, 0.0)
    acc_ref[...] += jnp.dot(h.astype(w2_ref.dtype), w2_ref[...],
                            preferred_element_type=jnp.float32)

    @pl.when(k == pl.num_programs(1) - 1)
    def _():
        o_ref[...] = acc_ref[...].astype(o_ref.dtype)


# ----------------------------- wrappers ---------------------------------------
def prepare_weights(w1, w2, *, compute_dtype=jnp.bfloat16):
    """Cast + zero-pad the weights ONCE (hoisted out of the per-call path)."""
    w1 = jnp.asarray(w1)
    w2 = jnp.asarray(w2)
    E, H = w1.shape
    assert w2.shape == (H, E), (w1.shape, w2.shape)
    plan = _plan(E, H, compute_dtype)
    E_pad, H_pad = plan["E_pad"], plan["H_pad"]
    w1p = w1.astype(compute_dtype)
    w2p = w2.astype(compute_dtype)
    if (E_pad, H_pad) != (E, H):
        w1p = jnp.pad(w1p, ((0, E_pad - E), (0, H_pad - H)))
        w2p = jnp.pad(w2p, ((0, H_pad - H), (0, E_pad - E)))
    return w1p, w2p, plan


def _feed_forward_prepared(x, w1p, w2p, plan, *, compute_dtype):
    B, L, E = x.shape
    E_pad, H_pad, th = plan["E_pad"], plan["H_pad"], plan["th"]
    out_dtype = x.dtype
    M = B * L

    # Row tile: as large as the plan allows, never more than the row count.
    tm = min(plan["tm_max"], _round_up(M, 16))
    # v7x megacore: if the whole batch fits one row tile but there is enough
    # work, split it so the "parallel" row axis can use both TensorCores.
    if _tensorcores_per_device() >= 2 and M >= 512 and _cdiv(M, tm) == 1:
        tm = min(tm, max(256, 16 * _cdiv(_cdiv(M, 2), 16)))
    n_i = _cdiv(M, tm)            # M is NOT padded: last row tile may be ragged
    n_k = H_pad // th

    # Cast activations to the compute dtype; zero-pad only the E (contraction)
    # axis -- padded x columns meet zero-padded weight rows, contributing 0.
    x2d = x.reshape(M, E).astype(compute_dtype)
    if E_pad != E:
        x2d = jnp.pad(x2d, ((0, 0), (0, E_pad - E)))

    cdt = jnp.dtype(compute_dtype).itemsize
    w_stream = 2 * E_pad * H_pad * cdt * (1 if plan["mode"] == "resident" else n_i)
    cost = pl.CostEstimate(
        flops=4 * M * E_pad * H_pad,
        transcendentals=0,
        bytes_accessed=(M * E_pad * cdt + w_stream
                        + M * E_pad * jnp.dtype(out_dtype).itemsize),
    )
    # VMEM limit derived from the actual tile plan (not hard-coded).
    vmem_limit = int(min(plan["vmem_cap"] * 0.9,
                         max(plan["need"] + (4 << 20), 32 << 20)))

    def _run(use_buffer_hints):
        hint = (lambda n: n) if use_buffer_hints else (lambda n: None)
        if plan["mode"] == "resident":
            grid = (n_i,)
            in_specs = [
                _spec((tm, E_pad), lambda i: (i, 0)),               # x: streamed
                _spec((E_pad, H_pad), lambda i: (0, 0), hint(1)),   # w1: resident
                _spec((H_pad, E_pad), lambda i: (0, 0), hint(1)),   # w2: resident
            ]
            out_specs = _spec((tm, E_pad), lambda i: (i, 0))
            scratch = []
            kernel = _ffn_kernel_resident
            dims = ("parallel",)
        else:
            grid = (n_i, n_k)
            in_specs = [
                _spec((tm, E_pad), lambda i, k: (i, 0), hint(1)),   # const along k
                _spec((E_pad, th), lambda i, k: (0, k)),            # w1 slab
                _spec((th, E_pad), lambda i, k: (k, 0)),            # w2 slab
            ]
            out_specs = _spec((tm, E_pad), lambda i, k: (i, 0), hint(1))
            scratch = [pltpu.VMEM((tm, E_pad), jnp.float32)]
            kernel = _ffn_kernel_tiled
            dims = ("parallel", "arbitrary")
        return pl.pallas_call(
            kernel,
            out_shape=jax.ShapeDtypeStruct((M, E_pad), out_dtype),
            grid_spec=pltpu.PrefetchScalarGridSpec(
                num_scalar_prefetch=0,
                grid=grid,
                in_specs=in_specs,
                out_specs=out_specs,
                scratch_shapes=scratch,
            ),
            compiler_params=pltpu.CompilerParams(
                dimension_semantics=dims,
                vmem_limit_bytes=vmem_limit,
            ),
            cost_estimate=cost,
        )(x2d, w1p, w2p)

    try:
        out2d = _run(True)
    except Exception:
        # Fallback if this JAX/Mosaic build rejects pipeline_mode=Buffered(1);
        # the VMEM budget already assumes default double-buffering, so the
        # no-hint variant always fits.
        out2d = _run(False)

    return out2d[:, :E].reshape(B, L, E)


def make_feed_forward(w1, w2, *, compute_dtype=jnp.bfloat16):
    """Returns `x -> FFN(x)` with the weight cast/pad hoisted (done once)."""
    w1p, w2p, plan = prepare_weights(w1, w2, compute_dtype=compute_dtype)

    def apply(x):
        return _feed_forward_prepared(x, w1p, w2p, plan,
                                      compute_dtype=compute_dtype)

    return apply


def feed_forward(x, w1, w2, *, compute_dtype=jnp.bfloat16):
    """One-shot convenience wrapper (prefer make_feed_forward to amortise the
    per-call weight cast/pad).  x: [B, L, E]; w1: [E, H]; w2: [H, E]."""
    w1p, w2p, plan = prepare_weights(w1, w2, compute_dtype=compute_dtype)
    return _feed_forward_prepared(x, w1p, w2p, plan, compute_dtype=compute_dtype)


if __name__ == "__main__":
    # small shapes consistent with the module: [batchSize, len, embSize]
    B, L, E, H = 2, 8, 32, 64

    key = jax.random.PRNGKey(0)
    kx, k1, k2 = jax.random.split(key, 3)

    x = jax.random.normal(kx, (B, L, E), dtype=jnp.float32)
    # deterministic synthetic weights (bias=False in the module)
    w1 = (jax.random.uniform(k1, (E, H), dtype=jnp.float32) - 0.5) * (2.0 / E) ** 0.5
    w2 = (jax.random.uniform(k2, (H, E), dtype=jnp.float32) - 0.5) * (2.0 / H) ** 0.5

    ffn = make_feed_forward(w1, w2)           # weight cast+pad hoisted out of the call
    out = jax.block_until_ready(ffn(x))

    # reference in plain JAX (f32); kernel computes in bf16 with f32 accumulation,
    # so use a slightly widened tolerance.
    ref = jnp.maximum(x.reshape(-1, E) @ w1, 0.0) @ w2
    assert out.shape == (B, L, E)
    assert jnp.allclose(out.reshape(-1, E), ref, atol=2e-2, rtol=2e-2), (
        float(jnp.max(jnp.abs(out.reshape(-1, E) - ref))))

    print("KERNEL_OK")
</pallas_src>

<mosaic_0001>
module attributes {stable_mosaic.version = 11 : i64} {
  func.func @_ffn_kernel_resident(%arg0: i32, %arg1: memref<16x128xbf16, #tpu.memory_space<vmem>>, %arg2: memref<128x128xbf16, #tpu.memory_space<vmem>>, %arg3: memref<128x128xbf16, #tpu.memory_space<vmem>>, %arg4: memref<16x128xf32, #tpu.memory_space<vmem>>) attributes {dimension_semantics = [#tpu.dimension_semantics<parallel>], iteration_bounds = array<i64: 1>, scalar_prefetch = 0 : i64, scratch_operands = 0 : i64, tpu.core_type = #tpu.core_type<tc>, window_params = [{transform_indices = @transform_0, window_bounds = array<i64: 16, 128>}, {pipeline_mode = #tpu.pipeline_mode<synchronous>, transform_indices = @transform_1, window_bounds = array<i64: 128, 128>}, {pipeline_mode = #tpu.pipeline_mode<synchronous>, transform_indices = @transform_2, window_bounds = array<i64: 128, 128>}, {transform_indices = @transform_3, window_bounds = array<i64: 16, 128>}]} {
    %c0 = arith.constant 0 : index
    %c0_0 = arith.constant 0 : index
    %0 = vector.load %arg1[%c0, %c0_0] : memref<16x128xbf16, #tpu.memory_space<vmem>>, vector<16x128xbf16>
    %c0_1 = arith.constant 0 : index
    %c0_2 = arith.constant 0 : index
    %1 = vector.load %arg2[%c0_1, %c0_2] : memref<128x128xbf16, #tpu.memory_space<vmem>>, vector<128x128xbf16>
    %cst = arith.constant dense<0.000000e+00> : vector<16x128xf32>
    %2 = tpu.matmul %0, %1, %cst {dimension_numbers = #tpu.dot_dimension_numbers<[1], [0], [0], [1], [0, 0, 1, 1], [], []>} : vector<16x128xbf16>, vector<128x128xbf16>, vector<16x128xf32> -> vector<16x128xf32>
    %cst_3 = arith.constant 0.000000e+00 : f32
    %3 = vector.broadcast %cst_3 : f32 to vector<16x128xf32>
    %4 = arith.maximumf %2, %3 : vector<16x128xf32>
    %5 = arith.truncf %4 : vector<16x128xf32> to vector<16x128xbf16>
    %c0_4 = arith.constant 0 : index
    %c0_5 = arith.constant 0 : index
    %6 = vector.load %arg3[%c0_4, %c0_5] : memref<128x128xbf16, #tpu.memory_space<vmem>>, vector<128x128xbf16>
    %cst_6 = arith.constant dense<0.000000e+00> : vector<16x128xf32>
    %7 = tpu.matmul %5, %6, %cst_6 {dimension_numbers = #tpu.dot_dimension_numbers<[1], [0], [0], [1], [0, 0, 1, 1], [], []>} : vector<16x128xbf16>, vector<128x128xbf16>, vector<16x128xf32> -> vector<16x128xf32>
    %c0_7 = arith.constant 0 : index
    %c0_8 = arith.constant 0 : index
    %8 = vector.load %arg4[%c0_7, %c0_8] : memref<16x128xf32, #tpu.memory_space<vmem>>, vector<16x128xf32>
    tpu.vector_store %arg4[%c0_7, %c0_8], %7 {strides = array<i32>} : memref<16x128xf32, #tpu.memory_space<vmem>>, vector<16x128xf32>,
    return
  }
  func.func @transform_0(%arg0: i32) -> (i32, i32) {
    %c0_i32 = arith.constant 0 : i32
    %c0_i32_0 = arith.constant 0 : i32
    return %arg0, %c0_i32 : i32, i32
  }
  func.func @transform_1(%arg0: i32) -> (i32, i32) {
    %c0_i32 = arith.constant 0 : i32
    %c0_i32_0 = arith.constant 0 : i32
    %c0_i32_1 = arith.constant 0 : i32
    return %c0_i32, %c0_i32_0 : i32, i32
  }
  func.func @transform_2(%arg0: i32) -> (i32, i32) {
    %c0_i32 = arith.constant 0 : i32
    %c0_i32_0 = arith.constant 0 : i32
    %c0_i32_1 = arith.constant 0 : i32
    return %c0_i32, %c0_i32_0 : i32, i32
  }
  func.func @transform_3(%arg0: i32) -> (i32, i32) {
    %c0_i32 = arith.constant 0 : i32
    %c0_i32_0 = arith.constant 0 : i32
    return %arg0, %c0_i32 : i32, i32
  }
}

module attributes {stable_mosaic.version = 11 : i64} {
  func.func @_ffn_kernel_resident(%arg0: i32, %arg1: memref<16x128xbf16, #tpu.memory_space<vmem>>, %arg2: memref<128x128xbf16, #tpu.memory_space<vmem>>, %arg3: memref<128x128xbf16, #tpu.memory_space<vmem>>, %arg4: memref<16x128xf32, #tpu.memory_space<vmem>>) attributes {dimension_semantics = [#tpu.dimension_semantics<parallel>], iteration_bounds = array<i64: 1>, scalar_prefetch = 0 : i64, scratch_operands = 0 : i64, tpu.core_type = #tpu.core_type<tc>, window_params = [{transform_indices = @transform_0, window_bounds = array<i64: 16, 128>}, {pipeline_mode = #tpu.pipeline_mode<synchronous>, transform_indices = @transform_1, window_bounds = array<i64: 128, 128>}, {pipeline_mode = #tpu.pipeline_mode<synchronous>, transform_indices = @transform_2, window_bounds = array<i64: 128, 128>}, {transform_indices = @transform_3, window_bounds = array<i64: 16, 128>}]} {
    %c0 = arith.constant 0 : index
    %c0_0 = arith.constant 0 : index
    %0 = vector.load %arg1[%c0, %c0_0] : memref<16x128xbf16, #tpu.memory_space<vmem>>, vector<16x128xbf16>
    %c0_1 = arith.constant 0 : index
    %c0_2 = arith.constant 0 : index
    %1 = vector.load %arg2[%c0_1, %c0_2] : memref<128x128xbf16, #tpu.memory_space<vmem>>, vector<128x128xbf16>
    %cst = arith.constant dense<0.000000e+00> : vector<16x128xf32>
    %2 = tpu.matmul %0, %1, %cst {dimension_numbers = #tpu.dot_dimension_numbers<[1], [0], [0], [1], [0, 0, 1, 1], [], []>} : vector<16x128xbf16>, vector<128x128xbf16>, vector<16x128xf32> -> vector<16x128xf32>
    %cst_3 = arith.constant 0.000000e+00 : f32
    %3 = vector.broadcast %cst_3 : f32 to vector<16x128xf32>
    %4 = arith.maximumf %2, %3 : vector<16x128xf32>
    %5 = arith.truncf %4 : vector<16x128xf32> to vector<16x128xbf16>
    %c0_4 = arith.constant 0 : index
    %c0_5 = arith.constant 0 : index
    %6 = vector.load %arg3[%c0_4, %c0_5] : memref<128x128xbf16, #tpu.memory_space<vmem>>, vector<128x128xbf16>
    %cst_6 = arith.constant dense<0.000000e+00> : vector<16x128xf32>
    %7 = tpu.matmul %5, %6, %cst_6 {dimension_numbers = #tpu.dot_dimension_numbers<[1], [0], [0], [1], [0, 0, 1, 1], [], []>} : vector<16x128xbf16>, vector<128x128xbf16>, vector<16x128xf32> -> vector<16x128xf32>
    %c0_7 = arith.constant 0 : index
    %c0_8 = arith.constant 0 : index
    %8 = vector.load %arg4[%c0_7, %c0_8] : memref<16x128xf32, #tpu.memory_space<vmem>>, vector<16x128xf32>
    tpu.vector_store %arg4[%c0_7, %c0_8], %7 {strides = array<i32>} : memref<16x128xf32, #tpu.memory_space<vmem>>, vector<16x128xf32>,
    return
  }
  func.func @transform_0(%arg0: i32) -> (i32, i32) {
    %c0_i32 = arith.constant 0 : i32
    %c0_i32_0 = arith.constant 0 : i32
    return %arg0, %c0_i32 : i32, i32
  }
  func.func @transform_1(%arg0: i32) -> (i32, i32) {
    %c0_i32 = arith.constant 0 : i32
    %c0_i32_0 = arith.constant 0 : i32
    %c0_i32_1 = arith.constant 0 : i32
    return %c0_i32, %c0_i32_0 : i32, i32
  }
  func.func @transform_2(%arg0: i32) -> (i32, i32) {
    %c0_i32 = arith.constant 0 : i32
    %c0_i32_0 = arith.constant 0 : i32
    %c0_i32_1 = arith.constant 0 : i32
    return %c0_i32, %c0_i32_0 : i32, i32
  }
  func.func @transform_3(%arg0: i32) -> (i32, i32) {
    %c0_i32 = arith.constant 0 : i32
    %c0_i32_0 = arith.constant 0 : i32
    return %arg0, %c0_i32 : i32, i32
  }
}

</mosaic_0001>

<llo_original>
// kernel: tpu_custom_call.1
$region0: #{tpu_custom_call.1}
  #allocation0 [shape = 'u32[]', space=smem, size = 0x4, offset = 0x4, fixed_abs, tag = 'smem constant byte address 0x4 - core index']
  #allocation1 [shape = 'u32[72,128]{1,0:T(1,128)}', space=vmem, size = 0x9000, scoped, tag = 'internal scratch']
  %s0 = inlined_call_operand.hbm [shape: bf16[16,128], index: 0, kind: input, shape index: {}]
  %s1 = inlined_call_operand.hbm [shape: bf16[128,128], index: 1, kind: input, shape index: {}]
  %s2 = inlined_call_operand.hbm [shape: bf16[128,128], index: 2, kind: input, shape index: {}]
  %s3 = inlined_call_operand.hbm [shape: f32[16,128], index: 3, kind: output, shape index: {}]
  %s4 = sld [smem:[#allocation0]]
  $region34: #{tpu_custom_call.1} parent=0
    _
  %s6 = ssub.s32 1, %s4
  %s7 = scalar_select 0, %s6, %s4
  $region1: #{tpu_custom_call.1} parent=0
    #allocation2 [shape = 'u8[4096]{0}', space=vmem, size = 0x1000, scoped, tag = 'input window, operand 0, single buffered']
    #allocation3 [shape = 's32[1]{0}', space=sflag, size = 0x4, scoped, tag = 'scoped memory for tpu_custom_call.1']
    #allocation4 [shape = 's32[1]{0}', space=sflag, size = 0x4, scoped, tag = 'scoped memory for tpu_custom_call.1']
    #allocation5 [shape = 'u8[32768]{0}', space=vmem, size = 0x8000, scoped, tag = 'input window, operand 1, single buffered']
    #allocation6 [shape = 's32[1]{0}', space=sflag, size = 0x4, scoped, tag = 'scoped memory for tpu_custom_call.1']
    #allocation7 [shape = 'u8[32768]{0}', space=vmem, size = 0x8000, scoped, tag = 'input window, operand 2, single buffered']
    #allocation8 [shape = 'u8[8192]{0}', space=vmem, size = 0x2000, scoped, tag = 'output window, operand 0, single buffered']
    %8 = vsyncpa [#allocation3], 0
    %9 = vsyncpa [#allocation6], 0
    %10 = vsyncpa [#allocation4], 0
    // Predicated region
    $region2: #{tpu_custom_call.1} parent=1 // pred_check
      _
    $region3: #{tpu_custom_call.1} parent=1 // pred_check_branch
      %12 = sbr.rel (0) target = $region5
    $region4: #{tpu_custom_call.1} parent=1 // pred_region
      %14 = vsyncadd [#allocation3], 0
      %s15 = sshll.u32 %s0, 4
      %s16 = int_to_ptr.hbm [resolvable:$true] %s15
      %s17 = sshll.u32 [#allocation2], 4
      %s18 = int_to_ptr.vmem [resolvable:$true] %s17
      %23 = dma.hbm_to_vmem [thread:$0]  %s16, 128, %s18, [#allocation3], 64, 64, 4
    $region5: #{tpu_custom_call.1} parent=1 // pred_fallthru
      _
    // Predicated region
    $region6: #{tpu_custom_call.1} parent=1 // pred_check
      _
    $region7: #{tpu_custom_call.1} parent=1 // pred_check_branch
      %25 = sbr.rel (0) target = $region9
    $region8: #{tpu_custom_call.1} parent=1 // pred_region
      %27 = vsyncadd [#allocation6], 0
      %s28 = sshll.u32 %s1, 4
      %s29 = int_to_ptr.hbm [resolvable:$true] %s28
      %s30 = sshll.u32 [#allocation5], 4
      %s31 = int_to_ptr.vmem [resolvable:$true] %s30
      %36 = dma.hbm_to_vmem [thread:$0]  %s29, 1024, %s31, [#allocation6], 64, 64, 4
    $region9: #{tpu_custom_call.1} parent=1 // pred_fallthru
      _
    // Predicated region
    $region10: #{tpu_custom_call.1} parent=1 // pred_check
      _
    $region11: #{tpu_custom_call.1} parent=1 // pred_check_branch
      %38 = sbr.rel (0) target = $region13
    $region12: #{tpu_custom_call.1} parent=1 // pred_region
      %40 = vsyncadd [#allocation6], 0
      %s41 = sshll.u32 %s2, 4
      %s42 = int_to_ptr.hbm [resolvable:$true] %s41
      %s43 = sshll.u32 [#allocation7], 4
      %s44 = int_to_ptr.vmem [resolvable:$true] %s43
      %49 = dma.hbm_to_vmem [thread:$0]  %s42, 1024, %s44, [#allocation6], 64, 64, 4
    $region13: #{tpu_custom_call.1} parent=1 // pred_fallthru
      _
    // Predicated region
    $region14: #{tpu_custom_call.1} parent=1 // pred_check
      _
    $region15: #{tpu_custom_call.1} parent=1 // pred_check_branch
      %51 = sbr.rel (0) target = $region17
    $region16: #{tpu_custom_call.1} parent=1 // pred_region
      %53 = dma.done [#allocation3], 128
    $region17: #{tpu_custom_call.1} parent=1 // pred_fallthru
      _
    // Predicated region
    $region18: #{tpu_custom_call.1} parent=1 // pred_check
      _
    $region19: #{tpu_custom_call.1} parent=1 // pred_check_branch
      %55 = sbr.rel (0) target = $region21
    $region20: #{tpu_custom_call.1} parent=1 // pred_region
      %57 = dma.done [#allocation6], 1024
    $region21: #{tpu_custom_call.1} parent=1 // pred_fallthru
      _
    // Predicated region
    $region22: #{tpu_custom_call.1} parent=1 // pred_check
      _
    $region23: #{tpu_custom_call.1} parent=1 // pred_check_branch
      %59 = sbr.rel (0) target = $region25
    $region24: #{tpu_custom_call.1} parent=1 // pred_region
      %61 = dma.done [#allocation6], 1024
    $region25: #{tpu_custom_call.1} parent=1 // pred_fallthru
      _
    %v62 = vld [vmem:[#allocation2] sm:$0xf]
    %v63 = vld [vmem:[#allocation2 + $0x4] sm:$0xf]
    %v64 = vld [vmem:[#allocation5] sm:$0xf]
    %v65 = vld [vmem:[#allocation5 + $0x4] sm:$0xf]
    %v66 = vld [vmem:[#allocation5 + $0x8] sm:$0xf]
    %v67 = vld [vmem:[#allocation5 + $0xc] sm:$0xf]
    %v68 = vld [vmem:[#allocation5 + $0x10] sm:$0xf]
    %v69 = vld [vmem:[#allocation5 + $0x14] sm:$0xf]
    %v70 = vld [vmem:[#allocation5 + $0x18] sm:$0xf]
    %v71 = vld [vmem:[#allocation5 + $0x1c] sm:$0xf]
    %v72 = vld [vmem:[#allocation5 + $0x20] sm:$0xf]
    %v73 = vld [vmem:[#allocation5 + $0x24] sm:$0xf]
    %v74 = vld [vmem:[#allocation5 + $0x28] sm:$0xf]
    %v75 = vld [vmem:[#allocation5 + $0x2c] sm:$0xf]
    %v76 = vld [vmem:[#allocation5 + $0x30] sm:$0xf]
    %v77 = vld [vmem:[#allocation5 + $0x34] sm:$0xf]
    %v78 = vld [vmem:[#allocation5 + $0x38] sm:$0xf]
    %v79 = vld [vmem:[#allocation5 + $0x3c] sm:$0xf]
    %v82 = vunpack.c.l.b16 %v62
    %v83 = vunpack.c.l.b16 %v63
    %v84 = vpack.c.b16 %v83, %v82
    %v102 = vunpack.c.l.b16 %v64
    %v103 = vunpack.c.l.b16 %v65
    %v104 = vunpack.c.l.b16 %v66
    %v105 = vunpack.c.l.b16 %v67
    %v106 = vunpack.c.l.b16 %v68
    %v107 = vunpack.c.l.b16 %v69
    %v108 = vunpack.c.l.b16 %v70
    %v109 = vunpack.c.l.b16 %v71
    %v110 = vunpack.c.l.b16 %v72
    %v111 = vunpack.c.l.b16 %v73
    %v112 = vunpack.c.l.b16 %v74
    %v113 = vunpack.c.l.b16 %v75
    %v114 = vunpack.c.l.b16 %v76
    %v115 = vunpack.c.l.b16 %v77
    %v116 = vunpack.c.l.b16 %v78
    %v117 = vunpack.c.l.b16 %v79
    %v118 = vpack.c.b16 %v103, %v102
    %v119 = vpack.c.b16 %v105, %v104
    %v120 = vpack.c.b16 %v107, %v106
    %v121 = vpack.c.b16 %v109, %v108
    %v122 = vpack.c.b16 %v111, %v110
    %v123 = vpack.c.b16 %v113, %v112
    %v124 = vpack.c.b16 %v115, %v114
    %v125 = vpack.c.b16 %v117, %v116
    %134 = vmatpush.bf16.msra.mxu0 %v125
    %135 = vmatpush.bf16.msra.mxu0 %v124
    %136 = vmatpush.bf16.msra.mxu0 %v123
    %137 = vmatpush.bf16.msra.mxu0 %v122
    %138 = vmatpush.bf16.msra.mxu0 %v121
    %139 = vmatpush.bf16.msra.mxu0 %v120
    %140 = vmatpush.bf16.msra.mxu0 %v119
    %141 = vmatpush.bf16.msra.mxu0 %v118
    %142 = vmatmul.bf16.gmra.mxu0 %v84
    %v143 = vpop.f32.mrf.mxu0
    %v144 = vadd.f32 0.0, %v143
    %v145 = vpop.f32.mrf.mxu0
    %v146 = vadd.f32 0.0, %v145
    %147 = vdwg.mxu0
    %v148 = vmax.f32 %v144, 0.0
    %v149 = vmax.f32 %v146, 0.0
    %v150 = vpack.c.bf16 %v149, %v148
    %v151 = vld [vmem:[#allocation7] sm:$0xf]
    %v152 = vld [vmem:[#allocation7 + $0x4] sm:$0xf]
    %v153 = vld [vmem:[#allocation7 + $0x8] sm:$0xf]
    %v154 = vld [vmem:[#allocation7 + $0xc] sm:$0xf]
    %v155 = vld [vmem:[#allocation7 + $0x10] sm:$0xf]
    %v156 = vld [vmem:[#allocation7 + $0x14] sm:$0xf]
    %v157 = vld [vmem:[#allocation7 + $0x18] sm:$0xf]
    %v158 = vld [vmem:[#allocation7 + $0x1c] sm:$0xf]
    %v159 = vld [vmem:[#allocation7 + $0x20] sm:$0xf]
    %v160 = vld [vmem:[#allocation7 + $0x24] sm:$0xf]
    %v161 = vld [vmem:[#allocation7 + $0x28] sm:$0xf]
    %v162 = vld [vmem:[#allocation7 + $0x2c] sm:$0xf]
    %v163 = vld [vmem:[#allocation7 + $0x30] sm:$0xf]
    %v164 = vld [vmem:[#allocation7 + $0x34] sm:$0xf]
    %v165 = vld [vmem:[#allocation7 + $0x38] sm:$0xf]
    %v166 = vld [vmem:[#allocation7 + $0x3c] sm:$0xf]
    %v183 = vunpack.c.l.b16 %v151
    %v184 = vunpack.c.l.b16 %v152
    %v185 = vunpack.c.l.b16 %v153
    %v186 = vunpack.c.l.b16 %v154
    %v187 = vunpack.c.l.b16 %v155
    %v188 = vunpack.c.l.b16 %v156
    %v189 = vunpack.c.l.b16 %v157
    %v190 = vunpack.c.l.b16 %v158
    %v191 = vunpack.c.l.b16 %v159
    %v192 = vunpack.c.l.b16 %v160
    %v193 = vunpack.c.l.b16 %v161
    %v194 = vunpack.c.l.b16 %v162
    %v195 = vunpack.c.l.b16 %v163
    %v196 = vunpack.c.l.b16 %v164
    %v197 = vunpack.c.l.b16 %v165
    %v198 = vunpack.c.l.b16 %v166
    %v199 = vpack.c.b16 %v184, %v183
    %v200 = vpack.c.b16 %v186, %v185
    %v201 = vpack.c.b16 %v188, %v187
    %v202 = vpack.c.b16 %v190, %v189
    %v203 = vpack.c.b16 %v192, %v191
    %v204 = vpack.c.b16 %v194, %v193
    %v205 = vpack.c.b16 %v196, %v195
    %v206 = vpack.c.b16 %v198, %v197
    %215 = vmatpush.bf16.msra.mxu0 %v206
    %216 = vmatpush.bf16.msra.mxu0 %v205
    %217 = vmatpush.bf16.msra.mxu0 %v204
    %218 = vmatpush.bf16.msra.mxu0 %v203
    %219 = vmatpush.bf16.msra.mxu0 %v202
    %220 = vmatpush.bf16.msra.mxu0 %v201
    %221 = vmatpush.bf16.msra.mxu0 %v200
    %222 = vmatpush.bf16.msra.mxu0 %v199
    %223 = vmatmul.bf16.gmra.mxu0 %v150
    %v224 = vpop.f32.mrf.mxu0
    %v225 = vadd.f32 0.0, %v224
    %v226 = vpop.f32.mrf.mxu0
    %v227 = vadd.f32 0.0, %v226
    %228 = vdwg.mxu0
    %229 = vst [vmem:[#allocation8] sm:$0xff] %v225
    %230 = vst [vmem:[#allocation8 + $0x8] sm:$0xff] %v227
    // Predicated region
    $region26: #{tpu_custom_call.1} parent=1 // pred_check
      _
    $region27: #{tpu_custom_call.1} parent=1 // pred_check_branch
      %232 = sbr.rel (0) target = $region29
    $region28: #{tpu_custom_call.1} parent=1 // pred_region
      %234 = vsyncadd [#allocation4], 0
      %s235 = sshll.u32 [#allocation8], 4
      %s236 = int_to_ptr.vmem [resolvable:$true] %s235
      %s237 = sshll.u32 %s3, 4
      %s238 = int_to_ptr.hbm [resolvable:$true] %s237
      %243 = dma.vmem_to_hbm [thread:$0]  %s236, 256, %s238, [#allocation4], 128, 128, 8
    $region29: #{tpu_custom_call.1} parent=1 // pred_fallthru
      _
    // Predicated region
    $region30: #{tpu_custom_call.1} parent=1 // pred_check
      _
    $region31: #{tpu_custom_call.1} parent=1 // pred_check_branch
      %245 = sbr.rel (0) target = $region33
    $region32: #{tpu_custom_call.1} parent=1 // pred_region
      %247 = dma.done [#allocation4], 256
    $region33: #{tpu_custom_call.1} parent=1 // pred_fallthru
      _
    %248 = vsyncpa [#allocation3], 1
    %249 = vsyncpa [#allocation6], 1
    %250 = vsyncpa [#allocation4], 1

// kernel: tpu_custom_call.1
$region0: #{tpu_custom_call.1}
  #allocation0 [shape = 'u32[]', space=smem, size = 0x4, offset = 0x4, fixed_abs, tag = 'smem constant byte address 0x4 - core index']
  #allocation1 [shape = 'u32[72,128]{1,0:T(1,128)}', space=vmem, size = 0x9000, scoped, tag = 'internal scratch']
  %s0 = inlined_call_operand.hbm [shape: bf16[16,128], index: 0, kind: input, shape index: {}]
  %s1 = inlined_call_operand.hbm [shape: bf16[128,128], index: 1, kind: input, shape index: {}]
  %s2 = inlined_call_operand.hbm [shape: bf16[128,128], index: 2, kind: input, shape index: {}]
  %s3 = inlined_call_operand.hbm [shape: f32[16,128], index: 3, kind: output, shape index: {}]
  %s4 = sld [smem:[#allocation0]]
  $region34: #{tpu_custom_call.1} parent=0
    _
  %s6 = ssub.s32 1, %s4
  %s7 = scalar_select 0, %s6, %s4
  $region1: #{tpu_custom_call.1} parent=0
    #allocation2 [shape = 'u8[4096]{0}', space=vmem, size = 0x1000, scoped, tag = 'input window, operand 0, single buffered']
    #allocation3 [shape = 's32[1]{0}', space=sflag, size = 0x4, scoped, tag = 'scoped memory for tpu_custom_call.1']
    #allocation4 [shape = 's32[1]{0}', space=sflag, size = 0x4, scoped, tag = 'scoped memory for tpu_custom_call.1']
    #allocation5 [shape = 'u8[32768]{0}', space=vmem, size = 0x8000, scoped, tag = 'input window, operand 1, single buffered']
    #allocation6 [shape = 's32[1]{0}', space=sflag, size = 0x4, scoped, tag = 'scoped memory for tpu_custom_call.1']
    #allocation7 [shape = 'u8[32768]{0}', space=vmem, size = 0x8000, scoped, tag = 'input window, operand 2, single buffered']
    #allocation8 [shape = 'u8[8192]{0}', space=vmem, size = 0x2000, scoped, tag = 'output window, operand 0, single buffered']
    %8 = vsyncpa [#allocation3], 0
    %9 = vsyncpa [#allocation6], 0
    %10 = vsyncpa [#allocation4], 0
    // Predicated region
    $region2: #{tpu_custom_call.1} parent=1 // pred_check
      _
    $region3: #{tpu_custom_call.1} parent=1 // pred_check_branch
      %12 = sbr.rel (0) target = $region5
    $region4: #{tpu_custom_call.1} parent=1 // pred_region
      %14 = vsyncadd [#allocation3], 0
      %s15 = sshll.u32 %s0, 4
      %s16 = int_to_ptr.hbm [resolvable:$true] %s15
      %s17 = sshll.u32 [#allocation2], 4
      %s18 = int_to_ptr.vmem [resolvable:$true] %s17
      %23 = dma.hbm_to_vmem [thread:$0]  %s16, 128, %s18, [#allocation3], 64, 64, 4
    $region5: #{tpu_custom_call.1} parent=1 // pred_fallthru
      _
    // Predicated region
    $region6: #{tpu_custom_call.1} parent=1 // pred_check
      _
    $region7: #{tpu_custom_call.1} parent=1 // pred_check_branch
      %25 = sbr.rel (0) target = $region9
    $region8: #{tpu_custom_call.1} parent=1 // pred_region
      %27 = vsyncadd [#allocation6], 0
      %s28 = sshll.u32 %s1, 4
      %s29 = int_to_ptr.hbm [resolvable:$true] %s28
      %s30 = sshll.u32 [#allocation5], 4
      %s31 = int_to_ptr.vmem [resolvable:$true] %s30
      %36 = dma.hbm_to_vmem [thread:$0]  %s29, 1024, %s31, [#allocation6], 64, 64, 4
    $region9: #{tpu_custom_call.1} parent=1 // pred_fallthru
      _
    // Predicated region
    $region10: #{tpu_custom_call.1} parent=1 // pred_check
      _
    $region11: #{tpu_custom_call.1} parent=1 // pred_check_branch
      %38 = sbr.rel (0) target = $region13
    $region12: #{tpu_custom_call.1} parent=1 // pred_region
      %40 = vsyncadd [#allocation6], 0
      %s41 = sshll.u32 %s2, 4
      %s42 = int_to_ptr.hbm [resolvable:$true] %s41
      %s43 = sshll.u32 [#allocation7], 4
      %s44 = int_to_ptr.vmem [resolvable:$true] %s43
      %49 = dma.hbm_to_vmem [thread:$0]  %s42, 1024, %s44, [#allocation6], 64, 64, 4
    $region13: #{tpu_custom_call.1} parent=1 // pred_fallthru
      _
    // Predicated region
    $region14: #{tpu_custom_call.1} parent=1 // pred_check
      _
    $region15: #{tpu_custom_call.1} parent=1 // pred_check_branch
      %51 = sbr.rel (0) target = $region17
    $region16: #{tpu_custom_call.1} parent=1 // pred_region
      %53 = dma.done [#allocation3], 128
    $region17: #{tpu_custom_call.1} parent=1 // pred_fallthru
      _
    // Predicated region
    $region18: #{tpu_custom_call.1} parent=1 // pred_check
      _
    $region19: #{tpu_custom_call.1} parent=1 // pred_check_branch
      %55 = sbr.rel (0) target = $region21
    $region20: #{tpu_custom_call.1} parent=1 // pred_region
      %57 = dma.done [#allocation6], 1024
    $region21: #{tpu_custom_call.1} parent=1 // pred_fallthru
      _
    // Predicated region
    $region22: #{tpu_custom_call.1} parent=1 // pred_check
      _
    $region23: #{tpu_custom_call.1} parent=1 // pred_check_branch
      %59 = sbr.rel (0) target = $region25
    $region24: #{tpu_custom_call.1} parent=1 // pred_region
      %61 = dma.done [#allocation6], 1024
    $region25: #{tpu_custom_call.1} parent=1 // pred_fallthru
      _
    %v62 = vld [vmem:[#allocation2] sm:$0xf]
    %v63 = vld [vmem:[#allocation2 + $0x4] sm:$0xf]
    %v64 = vld [vmem:[#allocation5] sm:$0xf]
    %v65 = vld [vmem:[#allocation5 + $0x4] sm:$0xf]
    %v66 = vld [vmem:[#allocation5 + $0x8] sm:$0xf]
    %v67 = vld [vmem:[#allocation5 + $0xc] sm:$0xf]
    %v68 = vld [vmem:[#allocation5 + $0x10] sm:$0xf]
    %v69 = vld [vmem:[#allocation5 + $0x14] sm:$0xf]
    %v70 = vld [vmem:[#allocation5 + $0x18] sm:$0xf]
    %v71 = vld [vmem:[#allocation5 + $0x1c] sm:$0xf]
    %v72 = vld [vmem:[#allocation5 + $0x20] sm:$0xf]
    %v73 = vld [vmem:[#allocation5 + $0x24] sm:$0xf]
    %v74 = vld [vmem:[#allocation5 + $0x28] sm:$0xf]
    %v75 = vld [vmem:[#allocation5 + $0x2c] sm:$0xf]
    %v76 = vld [vmem:[#allocation5 + $0x30] sm:$0xf]
    %v77 = vld [vmem:[#allocation5 + $0x34] sm:$0xf]
    %v78 = vld [vmem:[#allocation5 + $0x38] sm:$0xf]
    %v79 = vld [vmem:[#allocation5 + $0x3c] sm:$0xf]
    %v82 = vunpack.c.l.b16 %v62
    %v83 = vunpack.c.l.b16 %v63
    %v84 = vpack.c.b16 %v83, %v82
    %v102 = vunpack.c.l.b16 %v64
    %v103 = vunpack.c.l.b16 %v65
    %v104 = vunpack.c.l.b16 %v66
    %v105 = vunpack.c.l.b16 %v67
    %v106 = vunpack.c.l.b16 %v68
    %v107 = vunpack.c.l.b16 %v69
    %v108 = vunpack.c.l.b16 %v70
    %v109 = vunpack.c.l.b16 %v71
    %v110 = vunpack.c.l.b16 %v72
    %v111 = vunpack.c.l.b16 %v73
    %v112 = vunpack.c.l.b16 %v74
    %v113 = vunpack.c.l.b16 %v75
    %v114 = vunpack.c.l.b16 %v76
    %v115 = vunpack.c.l.b16 %v77
    %v116 = vunpack.c.l.b16 %v78
    %v117 = vunpack.c.l.b16 %v79
    %v118 = vpack.c.b16 %v103, %v102
    %v119 = vpack.c.b16 %v105, %v104
    %v120 = vpack.c.b16 %v107, %v106
    %v121 = vpack.c.b16 %v109, %v108
    %v122 = vpack.c.b16 %v111, %v110
    %v123 = vpack.c.b16 %v113, %v112
    %v124 = vpack.c.b16 %v115, %v114
    %v125 = vpack.c.b16 %v117, %v116
    %134 = vmatpush.bf16.msra.mxu0 %v125
    %135 = vmatpush.bf16.msra.mxu0 %v124
    %136 = vmatpush.bf16.msra.mxu0 %v123
    %137 = vmatpush.bf16.msra.mxu0 %v122
    %138 = vmatpush.bf16.msra.mxu0 %v121
    %139 = vmatpush.bf16.msra.mxu0 %v120
    %140 = vmatpush.bf16.msra.mxu0 %v119
    %141 = vmatpush.bf16.msra.mxu0 %v118
    %142 = vmatmul.bf16.gmra.mxu0 %v84
    %v143 = vpop.f32.mrf.mxu0
    %v144 = vadd.f32 0.0, %v143
    %v145 = vpop.f32.mrf.mxu0
    %v146 = vadd.f32 0.0, %v145
    %147 = vdwg.mxu0
    %v148 = vmax.f32 %v144, 0.0
    %v149 = vmax.f32 %v146, 0.0
    %v150 = vpack.c.bf16 %v149, %v148
    %v151 = vld [vmem:[#allocation7] sm:$0xf]
    %v152 = vld [vmem:[#allocation7 + $0x4] sm:$0xf]
    %v153 = vld [vmem:[#allocation7 + $0x8] sm:$0xf]
    %v154 = vld [vmem:[#allocation7 + $0xc] sm:$0xf]
    %v155 = vld [vmem:[#allocation7 + $0x10] sm:$0xf]
    %v156 = vld [vmem:[#allocation7 + $0x14] sm:$0xf]
    %v157 = vld [vmem:[#allocation7 + $0x18] sm:$0xf]
    %v158 = vld [vmem:[#allocation7 + $0x1c] sm:$0xf]
    %v159 = vld [vmem:[#allocation7 + $0x20] sm:$0xf]
    %v160 = vld [vmem:[#allocation7 + $0x24] sm:$0xf]
    %v161 = vld [vmem:[#allocation7 + $0x28] sm:$0xf]
    %v162 = vld [vmem:[#allocation7 + $0x2c] sm:$0xf]
    %v163 = vld [vmem:[#allocation7 + $0x30] sm:$0xf]
    %v164 = vld [vmem:[#allocation7 + $0x34] sm:$0xf]
    %v165 = vld [vmem:[#allocation7 + $0x38] sm:$0xf]
    %v166 = vld [vmem:[#allocation7 + $0x3c] sm:$0xf]
    %v183 = vunpack.c.l.b16 %v151
    %v184 = vunpack.c.l.b16 %v152
    %v185 = vunpack.c.l.b16 %v153
    %v186 = vunpack.c.l.b16 %v154
    %v187 = vunpack.c.l.b16 %v155
    %v188 = vunpack.c.l.b16 %v156
    %v189 = vunpack.c.l.b16 %v157
    %v190 = vunpack.c.l.b16 %v158
    %v191 = vunpack.c.l.b16 %v159
    %v192 = vunpack.c.l.b16 %v160
    %v193 = vunpack.c.l.b16 %v161
    %v194 = vunpack.c.l.b16 %v162
    %v195 = vunpack.c.l.b16 %v163
    %v196 = vunpack.c.l.b16 %v164
    %v197 = vunpack.c.l.b16 %v165
    %v198 = vunpack.c.l.b16 %v166
    %v199 = vpack.c.b16 %v184, %v183
    %v200 = vpack.c.b16 %v186, %v185
    %v201 = vpack.c.b16 %v188, %v187
    %v202 = vpack.c.b16 %v190, %v189
    %v203 = vpack.c.b16 %v192, %v191
    %v204 = vpack.c.b16 %v194, %v193
    %v205 = vpack.c.b16 %v196, %v195
    %v206 = vpack.c.b16 %v198, %v197
    %215 = vmatpush.bf16.msra.mxu0 %v206
    %216 = vmatpush.bf16.msra.mxu0 %v205
    %217 = vmatpush.bf16.msra.mxu0 %v204
    %218 = vmatpush.bf16.msra.mxu0 %v203
    %219 = vmatpush.bf16.msra.mxu0 %v202
    %220 = vmatpush.bf16.msra.mxu0 %v201
    %221 = vmatpush.bf16.msra.mxu0 %v200
    %222 = vmatpush.bf16.msra.mxu0 %v199
    %223 = vmatmul.bf16.gmra.mxu0 %v150
    %v224 = vpop.f32.mrf.mxu0
    %v225 = vadd.f32 0.0, %v224
    %v226 = vpop.f32.mrf.mxu0
    %v227 = vadd.f32 0.0, %v226
    %228 = vdwg.mxu0
    %229 = vst [vmem:[#allocation8] sm:$0xff] %v225
    %230 = vst [vmem:[#allocation8 + $0x8] sm:$0xff] %v227
    // Predicated region
    $region26: #{tpu_custom_call.1} parent=1 // pred_check
      _
    $region27: #{tpu_custom_call.1} parent=1 // pred_check_branch
      %232 = sbr.rel (0) target = $region29
    $region28: #{tpu_custom_call.1} parent=1 // pred_region
      %234 = vsyncadd [#allocation4], 0
      %s235 = sshll.u32 [#allocation8], 4
      %s236 = int_to_ptr.vmem [resolvable:$true] %s235
      %s237 = sshll.u32 %s3, 4
      %s238 = int_to_ptr.hbm [resolvable:$true] %s237
      %243 = dma.vmem_to_hbm [thread:$0]  %s236, 256, %s238, [#allocation4], 128, 128, 8
    $region29: #{tpu_custom_call.1} parent=1 // pred_fallthru
      _
    // Predicated region
    $region30: #{tpu_custom_call.1} parent=1 // pred_check
      _
    $region31: #{tpu_custom_call.1} parent=1 // pred_check_branch
      %245 = sbr.rel (0) target = $region33
    $region32: #{tpu_custom_call.1} parent=1 // pred_region
      %247 = dma.done [#allocation4], 256
    $region33: #{tpu_custom_call.1} parent=1 // pred_fallthru
      _
    %248 = vsyncpa [#allocation3], 1
    %249 = vsyncpa [#allocation6], 1
    %250 = vsyncpa [#allocation4], 1

</llo_original>
